<compile_context>
chip_gen: v5e
topology: v5e:2x2
jax: 0.10.0
libtpu: 0.0.40
codegen_flags: <defaults>
</compile_context>

<pallas_src>
import functools

import jax
import jax.numpy as jnp
from jax import lax
from jax.experimental import pallas as pl
from jax.experimental.pallas import tpu as pltpu


DEFAULT_TILE_SUBLANES = 16  # anchors per grid step = TS * 128


def _smooth_l1_kernel(target_ref, pred_ref, loss_ref, cnt_ref, *,
                      num_targets, beta, use_approx_recip):
    # target_ref: SMEM (B, T*4) float32
    # pred_ref:   VMEM (4, TS, 128)  -- coord-major, anchors dense in (sublane, lane)
    # loss_ref / cnt_ref: VMEM (TS, 128) accumulators, resident across the tile axis
    b = pl.program_id(0)
    tile = pl.program_id(1)

    @pl.when(tile == 0)
    def _():
        loss_ref[...] = jnp.zeros_like(loss_ref)
        cnt_ref[...] = jnp.zeros_like(cnt_ref)

    # Cast in-kernel (pred may be bf16 in HBM); compute in f32 on all generations.
    px1 = pred_ref[0].astype(jnp.float32)   # (TS, 128)
    py1 = pred_ref[1].astype(jnp.float32)
    px2 = pred_ref[2].astype(jnp.float32)
    py2 = pred_ref[3].astype(jnp.float32)
    area_p = (px2 - px1) * (py2 - py1)

    def match_one(carry, tx1, ty1, tx2, ty2):
        best_iou, bx1, by1, bx2, by2 = carry
        ix1 = jnp.maximum(px1, tx1)
        iy1 = jnp.maximum(py1, ty1)
        ix2 = jnp.minimum(px2, tx2)
        iy2 = jnp.minimum(py2, ty2)
        inter = jnp.maximum(ix2 - ix1, 0.0) * jnp.maximum(iy2 - iy1, 0.0)
        area_t = (tx2 - tx1) * (ty2 - ty1)           # scalar
        denom = area_p + area_t - inter + 1e-6
        if use_approx_recip:
            iou = inter * pl.reciprocal(denom, approx=True)   # rides the EUP slot
        else:
            iou = inter / denom                               # bit-faithful to torch
        upd = iou > best_iou          # strict '>' -> first max wins (torch .max semantics)
        return (jnp.where(upd, iou, best_iou),
                jnp.where(upd, tx1, bx1), jnp.where(upd, ty1, by1),
                jnp.where(upd, tx2, bx2), jnp.where(upd, ty2, by2))

    zeros = jnp.zeros_like(px1)
    carry = (jnp.full_like(px1, -1.0), zeros, zeros, zeros, zeros)

    if num_targets <= 16:
        # Small static T: fully unroll (straight-line code, LLO schedules freely).
        for t in range(num_targets):
            carry = match_one(carry,
                              target_ref[b, 4 * t + 0], target_ref[b, 4 * t + 1],
                              target_ref[b, 4 * t + 2], target_ref[b, 4 * t + 3])
    else:
        # Large T: partially-unrolled loop keeps vreg pressure bounded.
        def body(t, c):
            base = 4 * t
            return match_one(c,
                             target_ref[b, base + 0], target_ref[b, base + 1],
                             target_ref[b, base + 2], target_ref[b, base + 3])
        carry = lax.fori_loop(0, num_targets, body, carry, unroll=4)

    best_iou, bx1, by1, bx2, by2 = carry
    pos = best_iou > 0.5

    half_beta = 0.5 * beta
    half_over_beta = 0.5 / beta

    def sl1(d):
        ad = jnp.abs(d)
        return jnp.where(ad < beta, half_over_beta * ad * ad, ad - half_beta)

    per_anchor = (sl1(px1 - bx1) + sl1(py1 - by1) +
                  sl1(px2 - bx2) + sl1(py2 - by2))

    loss_ref[...] += jnp.where(pos, per_anchor, 0.0)
    cnt_ref[...] += jnp.where(pos, 1.0, 0.0)


def smooth_l1_loss(pred_list, target, beta=1.0,
                   tile_sublanes=DEFAULT_TILE_SUBLANES, use_approx_recip=False):
    """Pallas implementation of SmoothL1Loss.forward."""
    assert tile_sublanes % 8 == 0
    B = pred_list[0].shape[0]

    # --- lane-dense glue (no last-dim-4 permutes, no extra full-slab transpose) ---
    # per level: (B, 36, H, W) -> (B, 9, 4, HW) -> (B, 4, 9, HW) -> (B, 4, 9*HW)
    slabs = []
    for p in pred_list:
        _, _, H, W = p.shape
        q = p.reshape(B, 9, 4, H * W)
        q = jnp.transpose(q, (0, 2, 1, 3))
        slabs.append(q.reshape(B, 4, 9 * H * W))
    pred_cm = jnp.concatenate(slabs, axis=-1) if len(slabs) > 1 else slabs[0]
    A = pred_cm.shape[-1]

    # --- pad the anchor axis to TS*128 multiples with degenerate (0,0,0,0) boxes ---
    s_min = -(-A // 128)                                # sublane rows needed
    TS = min(tile_sublanes, ((s_min + 7) // 8) * 8)     # sublanes per grid tile
    S_pad = ((s_min + TS - 1) // TS) * TS
    A_pad = S_pad * 128
    num_tiles = S_pad // TS
    if A_pad != A:
        pred_cm = jnp.pad(pred_cm, ((0, 0), (0, 0), (0, A_pad - A)))
    # keep the model dtype in HBM; cast happens inside the kernel
    pred_tiled = pred_cm.reshape(B, 4, S_pad, 128)

    T = target.shape[1]
    target_flat = target.reshape(B, T * 4).astype(jnp.float32)   # SMEM, long axis last

    kernel = functools.partial(_smooth_l1_kernel, num_targets=T, beta=float(beta),
                               use_approx_recip=use_approx_recip)

    loss_part, cnt_part = pl.pallas_call(
        kernel,
        out_shape=(jax.ShapeDtypeStruct((B, TS, 128), jnp.float32),
                   jax.ShapeDtypeStruct((B, TS, 128), jnp.float32)),
        grid=(B, num_tiles),
        in_specs=[
            pl.BlockSpec(memory_space=pltpu.MemorySpace.SMEM),              # targets
            pl.BlockSpec((None, 4, TS, 128), lambda b, t: (b, 0, t, 0)),    # pred tile
        ],
        out_specs=(pl.BlockSpec((None, TS, 128), lambda b, t: (b, 0, 0)),
                   pl.BlockSpec((None, TS, 128), lambda b, t: (b, 0, 0))),
        compiler_params=pltpu.CompilerParams(
            dimension_semantics=("parallel", "arbitrary")),
    )(target_flat, pred_tiled)

    loss_sum = jnp.sum(loss_part)
    cnt = jnp.sum(cnt_part)
    # == 0.0 when there are no positives, matching the PyTorch branch.
    return loss_sum / jnp.maximum(cnt, 1.0)


def _reference_loss(pred_list, target, beta=1.0):
    """Pure-JAX mirror of the PyTorch forward (for verification)."""
    B = pred_list[0].shape[0]
    boxes = []
    for p in pred_list:
        _, _, H, W = p.shape
        boxes.append(jnp.transpose(p.reshape(B, 9, 4, H * W), (0, 1, 3, 2)))
    pred = jnp.concatenate(boxes, axis=2)                       # (B, 9, L, 4)
    L, T = pred.shape[2], target.shape[1]
    tgt = jnp.broadcast_to(target[:, None, None, :, :], (B, 9, L, T, 4))
    pr = pred[:, :, :, None, :]
    x1 = jnp.maximum(pr[..., 0], tgt[..., 0])
    y1 = jnp.maximum(pr[..., 1], tgt[..., 1])
    x2 = jnp.minimum(pr[..., 2], tgt[..., 2])
    y2 = jnp.minimum(pr[..., 3], tgt[..., 3])
    inter = jnp.clip(x2 - x1, 0) * jnp.clip(y2 - y1, 0)
    a1 = (pr[..., 2] - pr[..., 0]) * (pr[..., 3] - pr[..., 1])
    a2 = (tgt[..., 2] - tgt[..., 0]) * (tgt[..., 3] - tgt[..., 1])
    iou = inter / (a1 + a2 - inter + 1e-6)                      # (B, 9, L, T)
    best = iou.max(axis=-1)
    idx = iou.argmax(axis=-1)
    pos = best > 0.5
    idx_e = jnp.broadcast_to(idx[..., None, None], (B, 9, L, 1, 4))
    tb = jnp.take_along_axis(tgt, idx_e, axis=3)[:, :, :, 0, :]
    d = jnp.abs(pred - tb)
    sl1 = jnp.where(d < beta, 0.5 * d * d / beta, d - 0.5 * beta).sum(-1)
    num = pos.sum()
    return jnp.where(num > 0,
                     (sl1 * pos).sum() / jnp.maximum(num, 1).astype(jnp.float32),
                     0.0)


if __name__ == "__main__":
    key = jax.random.PRNGKey(0)
    B, T = 2, 8
    level_hw = [(4, 4), (2, 2)]                  # two FPN levels -> Ltot = 20, A = 180

    def make_boxes(k, prefix):
        k1, k2, k3, k4 = jax.random.split(k, 4)
        x1 = jax.random.uniform(k1, prefix, minval=0.0, maxval=0.5)
        y1 = jax.random.uniform(k2, prefix, minval=0.0, maxval=0.5)
        w = jax.random.uniform(k3, prefix, minval=0.2, maxval=0.5)
        h = jax.random.uniform(k4, prefix, minval=0.2, maxval=0.5)
        return jnp.stack([x1, y1, x1 + w, y1 + h], axis=-1)

    kp, kt = jax.random.split(key)
    pred_list = []
    for (H, W), k in zip(level_hw, jax.random.split(kp, len(level_hw))):
        bxs = make_boxes(k, (B, 9, H * W))                       # (B, 9, L, 4)
        p = jnp.transpose(bxs, (0, 1, 3, 2)).reshape(B, 36, H, W)
        pred_list.append(p.astype(jnp.float32))
    target = make_boxes(kt, (B, T)).astype(jnp.float32)          # (B, T, 4)

    out = smooth_l1_loss(pred_list, target, beta=1.0)
    out = jax.block_until_ready(out)

    ref = _reference_loss(pred_list, target, beta=1.0)
    assert jnp.allclose(out, ref, rtol=1e-5, atol=1e-5), (float(out), float(ref))

    print("KERNEL_OK")
</pallas_src>

<mosaic_0001>
module attributes {stable_mosaic.version = 11 : i64} {
  func.func @_smooth_l1_kernel(%arg0: i32, %arg1: i32, %arg2: memref<2x32xf32, #tpu.memory_space<smem>>, %arg3: memref<1x4x8x128xf32, #tpu.memory_space<vmem>>, %arg4: memref<1x8x128xf32, #tpu.memory_space<vmem>>, %arg5: memref<1x8x128xf32, #tpu.memory_space<vmem>>) attributes {dimension_semantics = [#tpu.dimension_semantics<parallel>, #tpu.dimension_semantics<arbitrary>], iteration_bounds = array<i64: 2, 1>, scalar_prefetch = 0 : i64, scratch_operands = 0 : i64, tpu.core_type = #tpu.core_type<tc>, window_params = [{transform_indices = @transform_0, window_bounds = array<i64: 2, 32>}, {transform_indices = @transform_1, window_bounds = array<i64: 1, 4, 8, 128>}, {transform_indices = @transform_2, window_bounds = array<i64: 1, 8, 128>}, {transform_indices = @transform_3, window_bounds = array<i64: 1, 8, 128>}]} {
    %c0_i32 = arith.constant 0 : i32
    %0 = arith.cmpi eq, %arg1, %c0_i32 : i32
    %1 = arith.extui %0 : i1 to i32
    %c0_i32_0 = arith.constant 0 : i32
    %2 = arith.cmpi ne, %1, %c0_i32_0 : i32
    scf.if %2 {
      %cst_70 = arith.constant 0.000000e+00 : f32
      %414 = vector.broadcast %cst_70 : f32 to vector<8x128xf32>
      %c0_71 = arith.constant 0 : index
      %c0_72 = arith.constant 0 : index
      %c0_73 = arith.constant 0 : index
      %415 = vector.load %arg4[%c0_71, %c0_72, %c0_73] : memref<1x8x128xf32, #tpu.memory_space<vmem>>, vector<1x8x128xf32>
      %416 = vector.shape_cast %415 : vector<1x8x128xf32> to vector<8x128xf32>
      %417 = vector.shape_cast %414 : vector<8x128xf32> to vector<1x8x128xf32>
      tpu.vector_store %arg4[%c0_71, %c0_72, %c0_73], %417 {strides = array<i32>} : memref<1x8x128xf32, #tpu.memory_space<vmem>>, vector<1x8x128xf32>,
      %cst_74 = arith.constant 0.000000e+00 : f32
      %418 = vector.broadcast %cst_74 : f32 to vector<8x128xf32>
      %c0_75 = arith.constant 0 : index
      %c0_76 = arith.constant 0 : index
      %c0_77 = arith.constant 0 : index
      %419 = vector.load %arg5[%c0_75, %c0_76, %c0_77] : memref<1x8x128xf32, #tpu.memory_space<vmem>>, vector<1x8x128xf32>
      %420 = vector.shape_cast %419 : vector<1x8x128xf32> to vector<8x128xf32>
      %421 = vector.shape_cast %418 : vector<8x128xf32> to vector<1x8x128xf32>
      tpu.vector_store %arg5[%c0_75, %c0_76, %c0_77], %421 {strides = array<i32>} : memref<1x8x128xf32, #tpu.memory_space<vmem>>, vector<1x8x128xf32>,
    } else {
    }
    %c0 = arith.constant 0 : index
    %c0_1 = arith.constant 0 : index
    %c0_2 = arith.constant 0 : index
    %c0_3 = arith.constant 0 : index
    %3 = vector.load %arg3[%c0, %c0_1, %c0_2, %c0_3] : memref<1x4x8x128xf32, #tpu.memory_space<vmem>>, vector<1x1x8x128xf32>
    %4 = vector.shape_cast %3 : vector<1x1x8x128xf32> to vector<8x128xf32>
    %c0_4 = arith.constant 0 : index
    %c1 = arith.constant 1 : index
    %c0_5 = arith.constant 0 : index
    %c0_6 = arith.constant 0 : index
    %5 = vector.load %arg3[%c0_4, %c1, %c0_5, %c0_6] : memref<1x4x8x128xf32, #tpu.memory_space<vmem>>, vector<1x1x8x128xf32>
    %6 = vector.shape_cast %5 : vector<1x1x8x128xf32> to vector<8x128xf32>
    %c0_7 = arith.constant 0 : index
    %c2 = arith.constant 2 : index
    %c0_8 = arith.constant 0 : index
    %c0_9 = arith.constant 0 : index
    %7 = vector.load %arg3[%c0_7, %c2, %c0_8, %c0_9] : memref<1x4x8x128xf32, #tpu.memory_space<vmem>>, vector<1x1x8x128xf32>
    %8 = vector.shape_cast %7 : vector<1x1x8x128xf32> to vector<8x128xf32>
    %c0_10 = arith.constant 0 : index
    %c3 = arith.constant 3 : index
    %c0_11 = arith.constant 0 : index
    %c0_12 = arith.constant 0 : index
    %9 = vector.load %arg3[%c0_10, %c3, %c0_11, %c0_12] : memref<1x4x8x128xf32, #tpu.memory_space<vmem>>, vector<1x1x8x128xf32>
    %10 = vector.shape_cast %9 : vector<1x1x8x128xf32> to vector<8x128xf32>
    %11 = arith.subf %8, %4 : vector<8x128xf32>
    %12 = arith.subf %10, %6 : vector<8x128xf32>
    %13 = arith.mulf %11, %12 : vector<8x128xf32>
    %cst = arith.constant 0.000000e+00 : f32
    %14 = vector.broadcast %cst : f32 to vector<8x128xf32>
    %cst_13 = arith.constant -1.000000e+00 : f32
    %15 = vector.broadcast %cst_13 : f32 to vector<8x128xf32>
    %16 = arith.index_cast %arg0 : i32 to index
    %c0_14 = arith.constant 0 : index
    %17 = memref.load %arg2[%16, %c0_14] : memref<2x32xf32, #tpu.memory_space<smem>>
    %18 = arith.index_cast %arg0 : i32 to index
    %c1_15 = arith.constant 1 : index
    %19 = memref.load %arg2[%18, %c1_15] : memref<2x32xf32, #tpu.memory_space<smem>>
    %20 = arith.index_cast %arg0 : i32 to index
    %c2_16 = arith.constant 2 : index
    %21 = memref.load %arg2[%20, %c2_16] : memref<2x32xf32, #tpu.memory_space<smem>>
    %22 = arith.index_cast %arg0 : i32 to index
    %c3_17 = arith.constant 3 : index
    %23 = memref.load %arg2[%22, %c3_17] : memref<2x32xf32, #tpu.memory_space<smem>>
    %24 = vector.broadcast %17 : f32 to vector<8x128xf32>
    %25 = arith.maximumf %4, %24 : vector<8x128xf32>
    %26 = vector.broadcast %19 : f32 to vector<8x128xf32>
    %27 = arith.maximumf %6, %26 : vector<8x128xf32>
    %28 = vector.broadcast %21 : f32 to vector<8x128xf32>
    %29 = arith.minimumf %8, %28 : vector<8x128xf32>
    %30 = vector.broadcast %23 : f32 to vector<8x128xf32>
    %31 = arith.minimumf %10, %30 : vector<8x128xf32>
    %32 = arith.subf %29, %25 : vector<8x128xf32>
    %cst_18 = arith.constant 0.000000e+00 : f32
    %33 = vector.broadcast %cst_18 : f32 to vector<8x128xf32>
    %34 = arith.maximumf %32, %33 : vector<8x128xf32>
    %35 = arith.subf %31, %27 : vector<8x128xf32>
    %cst_19 = arith.constant 0.000000e+00 : f32
    %36 = vector.broadcast %cst_19 : f32 to vector<8x128xf32>
    %37 = arith.maximumf %35, %36 : vector<8x128xf32>
    %38 = arith.mulf %34, %37 : vector<8x128xf32>
    %39 = arith.subf %21, %17 : f32
    %40 = arith.subf %23, %19 : f32
    %41 = arith.mulf %39, %40 : f32
    %42 = vector.broadcast %41 : f32 to vector<8x128xf32>
    %43 = arith.addf %13, %42 : vector<8x128xf32>
    %44 = arith.subf %43, %38 : vector<8x128xf32>
    %cst_20 = arith.constant 9.99999997E-7 : f32
    %45 = vector.broadcast %cst_20 : f32 to vector<8x128xf32>
    %46 = arith.addf %44, %45 : vector<8x128xf32>
    %47 = arith.divf %38, %46 : vector<8x128xf32>
    %48 = arith.cmpf ogt, %47, %15 : vector<8x128xf32>
    %49 = arith.select %48, %47, %15 : vector<8x128xi1>, vector<8x128xf32>
    %50 = vector.broadcast %17 : f32 to vector<8x128xf32>
    %51 = arith.select %48, %50, %14 : vector<8x128xi1>, vector<8x128xf32>
    %52 = vector.broadcast %19 : f32 to vector<8x128xf32>
    %53 = arith.select %48, %52, %14 : vector<8x128xi1>, vector<8x128xf32>
    %54 = vector.broadcast %21 : f32 to vector<8x128xf32>
    %55 = arith.select %48, %54, %14 : vector<8x128xi1>, vector<8x128xf32>
    %56 = vector.broadcast %23 : f32 to vector<8x128xf32>
    %57 = arith.select %48, %56, %14 : vector<8x128xi1>, vector<8x128xf32>
    %58 = arith.index_cast %arg0 : i32 to index
    %c4 = arith.constant 4 : index
    %59 = memref.load %arg2[%58, %c4] : memref<2x32xf32, #tpu.memory_space<smem>>
    %60 = arith.index_cast %arg0 : i32 to index
    %c5 = arith.constant 5 : index
    %61 = memref.load %arg2[%60, %c5] : memref<2x32xf32, #tpu.memory_space<smem>>
    %62 = arith.index_cast %arg0 : i32 to index
    %c6 = arith.constant 6 : index
    %63 = memref.load %arg2[%62, %c6] : memref<2x32xf32, #tpu.memory_space<smem>>
    %64 = arith.index_cast %arg0 : i32 to index
    %c7 = arith.constant 7 : index
    %65 = memref.load %arg2[%64, %c7] : memref<2x32xf32, #tpu.memory_space<smem>>
    %66 = vector.broadcast %59 : f32 to vector<8x128xf32>
    %67 = arith.maximumf %4, %66 : vector<8x128xf32>
    %68 = vector.broadcast %61 : f32 to vector<8x128xf32>
    %69 = arith.maximumf %6, %68 : vector<8x128xf32>
    %70 = vector.broadcast %63 : f32 to vector<8x128xf32>
    %71 = arith.minimumf %8, %70 : vector<8x128xf32>
    %72 = vector.broadcast %65 : f32 to vector<8x128xf32>
    %73 = arith.minimumf %10, %72 : vector<8x128xf32>
    %74 = arith.subf %71, %67 : vector<8x128xf32>
    %cst_21 = arith.constant 0.000000e+00 : f32
    %75 = vector.broadcast %cst_21 : f32 to vector<8x128xf32>
    %76 = arith.maximumf %74, %75 : vector<8x128xf32>
    %77 = arith.subf %73, %69 : vector<8x128xf32>
    %cst_22 = arith.constant 0.000000e+00 : f32
    %78 = vector.broadcast %cst_22 : f32 to vector<8x128xf32>
    %79 = arith.maximumf %77, %78 : vector<8x128xf32>
    %80 = arith.mulf %76, %79 : vector<8x128xf32>
    %81 = arith.subf %63, %59 : f32
    %82 = arith.subf %65, %61 : f32
    %83 = arith.mulf %81, %82 : f32
    %84 = vector.broadcast %83 : f32 to vector<8x128xf32>
    %85 = arith.addf %13, %84 : vector<8x128xf32>
    %86 = arith.subf %85, %80 : vector<8x128xf32>
    %cst_23 = arith.constant 9.99999997E-7 : f32
    %87 = vector.broadcast %cst_23 : f32 to vector<8x128xf32>
    %88 = arith.addf %86, %87 : vector<8x128xf32>
    %89 = arith.divf %80, %88 : vector<8x128xf32>
    %90 = arith.cmpf ogt, %89, %49 : vector<8x128xf32>
    %91 = arith.select %90, %89, %49 : vector<8x128xi1>, vector<8x128xf32>
    %92 = vector.broadcast %59 : f32 to vector<8x128xf32>
    %93 = arith.select %90, %92, %51 : vector<8x128xi1>, vector<8x128xf32>
    %94 = vector.broadcast %61 : f32 to vector<8x128xf32>
    %95 = arith.select %90, %94, %53 : vector<8x128xi1>, vector<8x128xf32>
    %96 = vector.broadcast %63 : f32 to vector<8x128xf32>
    %97 = arith.select %90, %96, %55 : vector<8x128xi1>, vector<8x128xf32>
    %98 = vector.broadcast %65 : f32 to vector<8x128xf32>
    %99 = arith.select %90, %98, %57 : vector<8x128xi1>, vector<8x128xf32>
    %100 = arith.index_cast %arg0 : i32 to index
    %c8 = arith.constant 8 : index
    %101 = memref.load %arg2[%100, %c8] : memref<2x32xf32, #tpu.memory_space<smem>>
    %102 = arith.index_cast %arg0 : i32 to index
    %c9 = arith.constant 9 : index
    %103 = memref.load %arg2[%102, %c9] : memref<2x32xf32, #tpu.memory_space<smem>>
    %104 = arith.index_cast %arg0 : i32 to index
    %c10 = arith.constant 10 : index
    %105 = memref.load %arg2[%104, %c10] : memref<2x32xf32, #tpu.memory_space<smem>>
    %106 = arith.index_cast %arg0 : i32 to index
    %c11 = arith.constant 11 : index
    %107 = memref.load %arg2[%106, %c11] : memref<2x32xf32, #tpu.memory_space<smem>>
    %108 = vector.broadcast %101 : f32 to vector<8x128xf32>
    %109 = arith.maximumf %4, %108 : vector<8x128xf32>
    %110 = vector.broadcast %103 : f32 to vector<8x128xf32>
    %111 = arith.maximumf %6, %110 : vector<8x128xf32>
    %112 = vector.broadcast %105 : f32 to vector<8x128xf32>
    %113 = arith.minimumf %8, %112 : vector<8x128xf32>
    %114 = vector.broadcast %107 : f32 to vector<8x128xf32>
    %115 = arith.minimumf %10, %114 : vector<8x128xf32>
    %116 = arith.subf %113, %109 : vector<8x128xf32>
    %cst_24 = arith.constant 0.000000e+00 : f32
    %117 = vector.broadcast %cst_24 : f32 to vector<8x128xf32>
    %118 = arith.maximumf %116, %117 : vector<8x128xf32>
    %119 = arith.subf %115, %111 : vector<8x128xf32>
    %cst_25 = arith.constant 0.000000e+00 : f32
    %120 = vector.broadcast %cst_25 : f32 to vector<8x128xf32>
    %121 = arith.maximumf %119, %120 : vector<8x128xf32>
    %122 = arith.mulf %118, %121 : vector<8x128xf32>
    %123 = arith.subf %105, %101 : f32
    %124 = arith.subf %107, %103 : f32
    %125 = arith.mulf %123, %124 : f32
    %126 = vector.broadcast %125 : f32 to vector<8x128xf32>
    %127 = arith.addf %13, %126 : vector<8x128xf32>
    %128 = arith.subf %127, %122 : vector<8x128xf32>
    %cst_26 = arith.constant 9.99999997E-7 : f32
    %129 = vector.broadcast %cst_26 : f32 to vector<8x128xf32>
    %130 = arith.addf %128, %129 : vector<8x128xf32>
    %131 = arith.divf %122, %130 : vector<8x128xf32>
    %132 = arith.cmpf ogt, %131, %91 : vector<8x128xf32>
    %133 = arith.select %132, %131, %91 : vector<8x128xi1>, vector<8x128xf32>
    %134 = vector.broadcast %101 : f32 to vector<8x128xf32>
    %135 = arith.select %132, %134, %93 : vector<8x128xi1>, vector<8x128xf32>
    %136 = vector.broadcast %103 : f32 to vector<8x128xf32>
    %137 = arith.select %132, %136, %95 : vector<8x128xi1>, vector<8x128xf32>
    %138 = vector.broadcast %105 : f32 to vector<8x128xf32>
    %139 = arith.select %132, %138, %97 : vector<8x128xi1>, vector<8x128xf32>
    %140 = vector.broadcast %107 : f32 to vector<8x128xf32>
    %141 = arith.select %132, %140, %99 : vector<8x128xi1>, vector<8x128xf32>
    %142 = arith.index_cast %arg0 : i32 to index
    %c12 = arith.constant 12 : index
    %143 = memref.load %arg2[%142, %c12] : memref<2x32xf32, #tpu.memory_space<smem>>
    %144 = arith.index_cast %arg0 : i32 to index
    %c13 = arith.constant 13 : index
    %145 = memref.load %arg2[%144, %c13] : memref<2x32xf32, #tpu.memory_space<smem>>
    %146 = arith.index_cast %arg0 : i32 to index
    %c14 = arith.constant 14 : index
    %147 = memref.load %arg2[%146, %c14] : memref<2x32xf32, #tpu.memory_space<smem>>
    %148 = arith.index_cast %arg0 : i32 to index
    %c15 = arith.constant 15 : index
    %149 = memref.load %arg2[%148, %c15] : memref<2x32xf32, #tpu.memory_space<smem>>
    %150 = vector.broadcast %143 : f32 to vector<8x128xf32>
    %151 = arith.maximumf %4, %150 : vector<8x128xf32>
    %152 = vector.broadcast %145 : f32 to vector<8x128xf32>
    %153 = arith.maximumf %6, %152 : vector<8x128xf32>
    %154 = vector.broadcast %147 : f32 to vector<8x128xf32>
    %155 = arith.minimumf %8, %154 : vector<8x128xf32>
    %156 = vector.broadcast %149 : f32 to vector<8x128xf32>
    %157 = arith.minimumf %10, %156 : vector<8x128xf32>
    %158 = arith.subf %155, %151 : vector<8x128xf32>
    %cst_27 = arith.constant 0.000000e+00 : f32
    %159 = vector.broadcast %cst_27 : f32 to vector<8x128xf32>
    %160 = arith.maximumf %158, %159 : vector<8x128xf32>
    %161 = arith.subf %157, %153 : vector<8x128xf32>
    %cst_28 = arith.constant 0.000000e+00 : f32
    %162 = vector.broadcast %cst_28 : f32 to vector<8x128xf32>
    %163 = arith.maximumf %161, %162 : vector<8x128xf32>
    %164 = arith.mulf %160, %163 : vector<8x128xf32>
    %165 = arith.subf %147, %143 : f32
    %166 = arith.subf %149, %145 : f32
    %167 = arith.mulf %165, %166 : f32
    %168 = vector.broadcast %167 : f32 to vector<8x128xf32>
    %169 = arith.addf %13, %168 : vector<8x128xf32>
    %170 = arith.subf %169, %164 : vector<8x128xf32>
    %cst_29 = arith.constant 9.99999997E-7 : f32
    %171 = vector.broadcast %cst_29 : f32 to vector<8x128xf32>
    %172 = arith.addf %170, %171 : vector<8x128xf32>
    %173 = arith.divf %164, %172 : vector<8x128xf32>
    %174 = arith.cmpf ogt, %173, %133 : vector<8x128xf32>
    %175 = arith.select %174, %173, %133 : vector<8x128xi1>, vector<8x128xf32>
    %176 = vector.broadcast %143 : f32 to vector<8x128xf32>
    %177 = arith.select %174, %176, %135 : vector<8x128xi1>, vector<8x128xf32>
    %178 = vector.broadcast %145 : f32 to vector<8x128xf32>
    %179 = arith.select %174, %178, %137 : vector<8x128xi1>, vector<8x128xf32>
    %180 = vector.broadcast %147 : f32 to vector<8x128xf32>
    %181 = arith.select %174, %180, %139 : vector<8x128xi1>, vector<8x128xf32>
    %182 = vector.broadcast %149 : f32 to vector<8x128xf32>
    %183 = arith.select %174, %182, %141 : vector<8x128xi1>, vector<8x128xf32>
    %184 = arith.index_cast %arg0 : i32 to index
    %c16 = arith.constant 16 : index
    %185 = memref.load %arg2[%184, %c16] : memref<2x32xf32, #tpu.memory_space<smem>>
    %186 = arith.index_cast %arg0 : i32 to index
    %c17 = arith.constant 17 : index
    %187 = memref.load %arg2[%186, %c17] : memref<2x32xf32, #tpu.memory_space<smem>>
    %188 = arith.index_cast %arg0 : i32 to index
    %c18 = arith.constant 18 : index
    %189 = memref.load %arg2[%188, %c18] : memref<2x32xf32, #tpu.memory_space<smem>>
    %190 = arith.index_cast %arg0 : i32 to index
    %c19 = arith.constant 19 : index
    %191 = memref.load %arg2[%190, %c19] : memref<2x32xf32, #tpu.memory_space<smem>>
    %192 = vector.broadcast %185 : f32 to vector<8x128xf32>
    %193 = arith.maximumf %4, %192 : vector<8x128xf32>
    %194 = vector.broadcast %187 : f32 to vector<8x128xf32>
    %195 = arith.maximumf %6, %194 : vector<8x128xf32>
    %196 = vector.broadcast %189 : f32 to vector<8x128xf32>
    %197 = arith.minimumf %8, %196 : vector<8x128xf32>
    %198 = vector.broadcast %191 : f32 to vector<8x128xf32>
    %199 = arith.minimumf %10, %198 : vector<8x128xf32>
    %200 = arith.subf %197, %193 : vector<8x128xf32>
    %cst_30 = arith.constant 0.000000e+00 : f32
    %201 = vector.broadcast %cst_30 : f32 to vector<8x128xf32>
    %202 = arith.maximumf %200, %201 : vector<8x128xf32>
    %203 = arith.subf %199, %195 : vector<8x128xf32>
    %cst_31 = arith.constant 0.000000e+00 : f32
    %204 = vector.broadcast %cst_31 : f32 to vector<8x128xf32>
    %205 = arith.maximumf %203, %204 : vector<8x128xf32>
    %206 = arith.mulf %202, %205 : vector<8x128xf32>
    %207 = arith.subf %189, %185 : f32
    %208 = arith.subf %191, %187 : f32
    %209 = arith.mulf %207, %208 : f32
    %210 = vector.broadcast %209 : f32 to vector<8x128xf32>
    %211 = arith.addf %13, %210 : vector<8x128xf32>
    %212 = arith.subf %211, %206 : vector<8x128xf32>
    %cst_32 = arith.constant 9.99999997E-7 : f32
    %213 = vector.broadcast %cst_32 : f32 to vector<8x128xf32>
    %214 = arith.addf %212, %213 : vector<8x128xf32>
    %215 = arith.divf %206, %214 : vector<8x128xf32>
    %216 = arith.cmpf ogt, %215, %175 : vector<8x128xf32>
    %217 = arith.select %216, %215, %175 : vector<8x128xi1>, vector<8x128xf32>
    %218 = vector.broadcast %185 : f32 to vector<8x128xf32>
    %219 = arith.select %216, %218, %177 : vector<8x128xi1>, vector<8x128xf32>
    %220 = vector.broadcast %187 : f32 to vector<8x128xf32>
    %221 = arith.select %216, %220, %179 : vector<8x128xi1>, vector<8x128xf32>
    %222 = vector.broadcast %189 : f32 to vector<8x128xf32>
    %223 = arith.select %216, %222, %181 : vector<8x128xi1>, vector<8x128xf32>
    %224 = vector.broadcast %191 : f32 to vector<8x128xf32>
    %225 = arith.select %216, %224, %183 : vector<8x128xi1>, vector<8x128xf32>
    %226 = arith.index_cast %arg0 : i32 to index
    %c20 = arith.constant 20 : index
    %227 = memref.load %arg2[%226, %c20] : memref<2x32xf32, #tpu.memory_space<smem>>
    %228 = arith.index_cast %arg0 : i32 to index
    %c21 = arith.constant 21 : index
    %229 = memref.load %arg2[%228, %c21] : memref<2x32xf32, #tpu.memory_space<smem>>
    %230 = arith.index_cast %arg0 : i32 to index
    %c22 = arith.constant 22 : index
    %231 = memref.load %arg2[%230, %c22] : memref<2x32xf32, #tpu.memory_space<smem>>
    %232 = arith.index_cast %arg0 : i32 to index
    %c23 = arith.constant 23 : index
    %233 = memref.load %arg2[%232, %c23] : memref<2x32xf32, #tpu.memory_space<smem>>
    %234 = vector.broadcast %227 : f32 to vector<8x128xf32>
    %235 = arith.maximumf %4, %234 : vector<8x128xf32>
    %236 = vector.broadcast %229 : f32 to vector<8x128xf32>
    %237 = arith.maximumf %6, %236 : vector<8x128xf32>
    %238 = vector.broadcast %231 : f32 to vector<8x128xf32>
    %239 = arith.minimumf %8, %238 : vector<8x128xf32>
    %240 = vector.broadcast %233 : f32 to vector<8x128xf32>
    %241 = arith.minimumf %10, %240 : vector<8x128xf32>
    %242 = arith.subf %239, %235 : vector<8x128xf32>
    %cst_33 = arith.constant 0.000000e+00 : f32
    %243 = vector.broadcast %cst_33 : f32 to vector<8x128xf32>
    %244 = arith.maximumf %242, %243 : vector<8x128xf32>
    %245 = arith.subf %241, %237 : vector<8x128xf32>
    %cst_34 = arith.constant 0.000000e+00 : f32
    %246 = vector.broadcast %cst_34 : f32 to vector<8x128xf32>
    %247 = arith.maximumf %245, %246 : vector<8x128xf32>
    %248 = arith.mulf %244, %247 : vector<8x128xf32>
    %249 = arith.subf %231, %227 : f32
    %250 = arith.subf %233, %229 : f32
    %251 = arith.mulf %249, %250 : f32
    %252 = vector.broadcast %251 : f32 to vector<8x128xf32>
    %253 = arith.addf %13, %252 : vector<8x128xf32>
    %254 = arith.subf %253, %248 : vector<8x128xf32>
    %cst_35 = arith.constant 9.99999997E-7 : f32
    %255 = vector.broadcast %cst_35 : f32 to vector<8x128xf32>
    %256 = arith.addf %254, %255 : vector<8x128xf32>
    %257 = arith.divf %248, %256 : vector<8x128xf32>
    %258 = arith.cmpf ogt, %257, %217 : vector<8x128xf32>
    %259 = arith.select %258, %257, %217 : vector<8x128xi1>, vector<8x128xf32>
    %260 = vector.broadcast %227 : f32 to vector<8x128xf32>
    %261 = arith.select %258, %260, %219 : vector<8x128xi1>, vector<8x128xf32>
    %262 = vector.broadcast %229 : f32 to vector<8x128xf32>
    %263 = arith.select %258, %262, %221 : vector<8x128xi1>, vector<8x128xf32>
    %264 = vector.broadcast %231 : f32 to vector<8x128xf32>
    %265 = arith.select %258, %264, %223 : vector<8x128xi1>, vector<8x128xf32>
    %266 = vector.broadcast %233 : f32 to vector<8x128xf32>
    %267 = arith.select %258, %266, %225 : vector<8x128xi1>, vector<8x128xf32>
    %268 = arith.index_cast %arg0 : i32 to index
    %c24 = arith.constant 24 : index
    %269 = memref.load %arg2[%268, %c24] : memref<2x32xf32, #tpu.memory_space<smem>>
    %270 = arith.index_cast %arg0 : i32 to index
    %c25 = arith.constant 25 : index
    %271 = memref.load %arg2[%270, %c25] : memref<2x32xf32, #tpu.memory_space<smem>>
    %272 = arith.index_cast %arg0 : i32 to index
    %c26 = arith.constant 26 : index
    %273 = memref.load %arg2[%272, %c26] : memref<2x32xf32, #tpu.memory_space<smem>>
    %274 = arith.index_cast %arg0 : i32 to index
    %c27 = arith.constant 27 : index
    %275 = memref.load %arg2[%274, %c27] : memref<2x32xf32, #tpu.memory_space<smem>>
    %276 = vector.broadcast %269 : f32 to vector<8x128xf32>
    %277 = arith.maximumf %4, %276 : vector<8x128xf32>
    %278 = vector.broadcast %271 : f32 to vector<8x128xf32>
    %279 = arith.maximumf %6, %278 : vector<8x128xf32>
    %280 = vector.broadcast %273 : f32 to vector<8x128xf32>
    %281 = arith.minimumf %8, %280 : vector<8x128xf32>
    %282 = vector.broadcast %275 : f32 to vector<8x128xf32>
    %283 = arith.minimumf %10, %282 : vector<8x128xf32>
    %284 = arith.subf %281, %277 : vector<8x128xf32>
    %cst_36 = arith.constant 0.000000e+00 : f32
    %285 = vector.broadcast %cst_36 : f32 to vector<8x128xf32>
    %286 = arith.maximumf %284, %285 : vector<8x128xf32>
    %287 = arith.subf %283, %279 : vector<8x128xf32>
    %cst_37 = arith.constant 0.000000e+00 : f32
    %288 = vector.broadcast %cst_37 : f32 to vector<8x128xf32>
    %289 = arith.maximumf %287, %288 : vector<8x128xf32>
    %290 = arith.mulf %286, %289 : vector<8x128xf32>
    %291 = arith.subf %273, %269 : f32
    %292 = arith.subf %275, %271 : f32
    %293 = arith.mulf %291, %292 : f32
    %294 = vector.broadcast %293 : f32 to vector<8x128xf32>
    %295 = arith.addf %13, %294 : vector<8x128xf32>
    %296 = arith.subf %295, %290 : vector<8x128xf32>
    %cst_38 = arith.constant 9.99999997E-7 : f32
    %297 = vector.broadcast %cst_38 : f32 to vector<8x128xf32>
    %298 = arith.addf %296, %297 : vector<8x128xf32>
    %299 = arith.divf %290, %298 : vector<8x128xf32>
    %300 = arith.cmpf ogt, %299, %259 : vector<8x128xf32>
    %301 = arith.select %300, %299, %259 : vector<8x128xi1>, vector<8x128xf32>
    %302 = vector.broadcast %269 : f32 to vector<8x128xf32>
    %303 = arith.select %300, %302, %261 : vector<8x128xi1>, vector<8x128xf32>
    %304 = vector.broadcast %271 : f32 to vector<8x128xf32>
    %305 = arith.select %300, %304, %263 : vector<8x128xi1>, vector<8x128xf32>
    %306 = vector.broadcast %273 : f32 to vector<8x128xf32>
    %307 = arith.select %300, %306, %265 : vector<8x128xi1>, vector<8x128xf32>
    %308 = vector.broadcast %275 : f32 to vector<8x128xf32>
    %309 = arith.select %300, %308, %267 : vector<8x128xi1>, vector<8x128xf32>
    %310 = arith.index_cast %arg0 : i32 to index
    %c28 = arith.constant 28 : index
    %311 = memref.load %arg2[%310, %c28] : memref<2x32xf32, #tpu.memory_space<smem>>
    %312 = arith.index_cast %arg0 : i32 to index
    %c29 = arith.constant 29 : index
    %313 = memref.load %arg2[%312, %c29] : memref<2x32xf32, #tpu.memory_space<smem>>
    %314 = arith.index_cast %arg0 : i32 to index
    %c30 = arith.constant 30 : index
    %315 = memref.load %arg2[%314, %c30] : memref<2x32xf32, #tpu.memory_space<smem>>
    %316 = arith.index_cast %arg0 : i32 to index
    %c31 = arith.constant 31 : index
    %317 = memref.load %arg2[%316, %c31] : memref<2x32xf32, #tpu.memory_space<smem>>
    %318 = vector.broadcast %311 : f32 to vector<8x128xf32>
    %319 = arith.maximumf %4, %318 : vector<8x128xf32>
    %320 = vector.broadcast %313 : f32 to vector<8x128xf32>
    %321 = arith.maximumf %6, %320 : vector<8x128xf32>
    %322 = vector.broadcast %315 : f32 to vector<8x128xf32>
    %323 = arith.minimumf %8, %322 : vector<8x128xf32>
    %324 = vector.broadcast %317 : f32 to vector<8x128xf32>
    %325 = arith.minimumf %10, %324 : vector<8x128xf32>
    %326 = arith.subf %323, %319 : vector<8x128xf32>
    %cst_39 = arith.constant 0.000000e+00 : f32
    %327 = vector.broadcast %cst_39 : f32 to vector<8x128xf32>
    %328 = arith.maximumf %326, %327 : vector<8x128xf32>
    %329 = arith.subf %325, %321 : vector<8x128xf32>
    %cst_40 = arith.constant 0.000000e+00 : f32
    %330 = vector.broadcast %cst_40 : f32 to vector<8x128xf32>
    %331 = arith.maximumf %329, %330 : vector<8x128xf32>
    %332 = arith.mulf %328, %331 : vector<8x128xf32>
    %333 = arith.subf %315, %311 : f32
    %334 = arith.subf %317, %313 : f32
    %335 = arith.mulf %333, %334 : f32
    %336 = vector.broadcast %335 : f32 to vector<8x128xf32>
    %337 = arith.addf %13, %336 : vector<8x128xf32>
    %338 = arith.subf %337, %332 : vector<8x128xf32>
    %cst_41 = arith.constant 9.99999997E-7 : f32
    %339 = vector.broadcast %cst_41 : f32 to vector<8x128xf32>
    %340 = arith.addf %338, %339 : vector<8x128xf32>
    %341 = arith.divf %332, %340 : vector<8x128xf32>
    %342 = arith.cmpf ogt, %341, %301 : vector<8x128xf32>
    %343 = arith.select %342, %341, %301 : vector<8x128xi1>, vector<8x128xf32>
    %344 = vector.broadcast %311 : f32 to vector<8x128xf32>
    %345 = arith.select %342, %344, %303 : vector<8x128xi1>, vector<8x128xf32>
    %346 = vector.broadcast %313 : f32 to vector<8x128xf32>
    %347 = arith.select %342, %346, %305 : vector<8x128xi1>, vector<8x128xf32>
    %348 = vector.broadcast %315 : f32 to vector<8x128xf32>
    %349 = arith.select %342, %348, %307 : vector<8x128xi1>, vector<8x128xf32>
    %350 = vector.broadcast %317 : f32 to vector<8x128xf32>
    %351 = arith.select %342, %350, %309 : vector<8x128xi1>, vector<8x128xf32>
    %cst_42 = arith.constant 5.000000e-01 : f32
    %352 = vector.broadcast %cst_42 : f32 to vector<8x128xf32>
    %353 = arith.cmpf ogt, %343, %352 : vector<8x128xf32>
    %354 = arith.subf %4, %345 : vector<8x128xf32>
    %355 = math.absf %354 : vector<8x128xf32>
    %cst_43 = arith.constant 1.000000e+00 : f32
    %356 = vector.broadcast %cst_43 : f32 to vector<8x128xf32>
    %357 = arith.cmpf olt, %355, %356 : vector<8x128xf32>
    %cst_44 = arith.constant 5.000000e-01 : f32
    %358 = vector.broadcast %cst_44 : f32 to vector<8x128xf32>
    %359 = arith.mulf %358, %355 : vector<8x128xf32>
    %360 = arith.mulf %359, %355 : vector<8x128xf32>
    %cst_45 = arith.constant 5.000000e-01 : f32
    %361 = vector.broadcast %cst_45 : f32 to vector<8x128xf32>
    %362 = arith.subf %355, %361 : vector<8x128xf32>
    %363 = arith.select %357, %360, %362 : vector<8x128xi1>, vector<8x128xf32>
    %364 = arith.subf %6, %347 : vector<8x128xf32>
    %365 = math.absf %364 : vector<8x128xf32>
    %cst_46 = arith.constant 1.000000e+00 : f32
    %366 = vector.broadcast %cst_46 : f32 to vector<8x128xf32>
    %367 = arith.cmpf olt, %365, %366 : vector<8x128xf32>
    %cst_47 = arith.constant 5.000000e-01 : f32
    %368 = vector.broadcast %cst_47 : f32 to vector<8x128xf32>
    %369 = arith.mulf %368, %365 : vector<8x128xf32>
    %370 = arith.mulf %369, %365 : vector<8x128xf32>
    %cst_48 = arith.constant 5.000000e-01 : f32
    %371 = vector.broadcast %cst_48 : f32 to vector<8x128xf32>
    %372 = arith.subf %365, %371 : vector<8x128xf32>
    %373 = arith.select %367, %370, %372 : vector<8x128xi1>, vector<8x128xf32>
    %374 = arith.addf %363, %373 : vector<8x128xf32>
    %375 = arith.subf %8, %349 : vector<8x128xf32>
    %376 = math.absf %375 : vector<8x128xf32>
    %cst_49 = arith.constant 1.000000e+00 : f32
    %377 = vector.broadcast %cst_49 : f32 to vector<8x128xf32>
    %378 = arith.cmpf olt, %376, %377 : vector<8x128xf32>
    %cst_50 = arith.constant 5.000000e-01 : f32
    %379 = vector.broadcast %cst_50 : f32 to vector<8x128xf32>
    %380 = arith.mulf %379, %376 : vector<8x128xf32>
    %381 = arith.mulf %380, %376 : vector<8x128xf32>
    %cst_51 = arith.constant 5.000000e-01 : f32
    %382 = vector.broadcast %cst_51 : f32 to vector<8x128xf32>
    %383 = arith.subf %376, %382 : vector<8x128xf32>
    %384 = arith.select %378, %381, %383 : vector<8x128xi1>, vector<8x128xf32>
    %385 = arith.addf %374, %384 : vector<8x128xf32>
    %386 = arith.subf %10, %351 : vector<8x128xf32>
    %387 = math.absf %386 : vector<8x128xf32>
    %cst_52 = arith.constant 1.000000e+00 : f32
    %388 = vector.broadcast %cst_52 : f32 to vector<8x128xf32>
    %389 = arith.cmpf olt, %387, %388 : vector<8x128xf32>
    %cst_53 = arith.constant 5.000000e-01 : f32
    %390 = vector.broadcast %cst_53 : f32 to vector<8x128xf32>
    %391 = arith.mulf %390, %387 : vector<8x128xf32>
    %392 = arith.mulf %391, %387 : vector<8x128xf32>
    %cst_54 = arith.constant 5.000000e-01 : f32
    %393 = vector.broadcast %cst_54 : f32 to vector<8x128xf32>
    %394 = arith.subf %387, %393 : vector<8x128xf32>
    %395 = arith.select %389, %392, %394 : vector<8x128xi1>, vector<8x128xf32>
    %396 = arith.addf %385, %395 : vector<8x128xf32>
    %c0_55 = arith.constant 0 : index
    %c0_56 = arith.constant 0 : index
    %c0_57 = arith.constant 0 : index
    %397 = vector.load %arg4[%c0_55, %c0_56, %c0_57] : memref<1x8x128xf32, #tpu.memory_space<vmem>>, vector<1x8x128xf32>
    %398 = vector.shape_cast %397 : vector<1x8x128xf32> to vector<8x128xf32>
    %cst_58 = arith.constant 0.000000e+00 : f32
    %399 = vector.broadcast %cst_58 : f32 to vector<8x128xf32>
    %400 = arith.select %353, %396, %399 : vector<8x128xi1>, vector<8x128xf32>
    %401 = arith.addf %398, %400 : vector<8x128xf32>
    %c0_59 = arith.constant 0 : index
    %c0_60 = arith.constant 0 : index
    %c0_61 = arith.constant 0 : index
    %402 = vector.load %arg4[%c0_59, %c0_60, %c0_61] : memref<1x8x128xf32, #tpu.memory_space<vmem>>, vector<1x8x128xf32>
    %403 = vector.shape_cast %402 : vector<1x8x128xf32> to vector<8x128xf32>
    %404 = vector.shape_cast %401 : vector<8x128xf32> to vector<1x8x128xf32>
    tpu.vector_store %arg4[%c0_59, %c0_60, %c0_61], %404 {strides = array<i32>} : memref<1x8x128xf32, #tpu.memory_space<vmem>>, vector<1x8x128xf32>,
    %c0_62 = arith.constant 0 : index
    %c0_63 = arith.constant 0 : index
    %c0_64 = arith.constant 0 : index
    %405 = vector.load %arg5[%c0_62, %c0_63, %c0_64] : memref<1x8x128xf32, #tpu.memory_space<vmem>>, vector<1x8x128xf32>
    %406 = vector.shape_cast %405 : vector<1x8x128xf32> to vector<8x128xf32>
    %cst_65 = arith.constant 1.000000e+00 : f32
    %cst_66 = arith.constant 0.000000e+00 : f32
    %407 = vector.broadcast %cst_65 : f32 to vector<8x128xf32>
    %408 = vector.broadcast %cst_66 : f32 to vector<8x128xf32>
    %409 = arith.select %353, %407, %408 : vector<8x128xi1>, vector<8x128xf32>
    %410 = arith.addf %406, %409 : vector<8x128xf32>
    %c0_67 = arith.constant 0 : index
    %c0_68 = arith.constant 0 : index
    %c0_69 = arith.constant 0 : index
    %411 = vector.load %arg5[%c0_67, %c0_68, %c0_69] : memref<1x8x128xf32, #tpu.memory_space<vmem>>, vector<1x8x128xf32>
    %412 = vector.shape_cast %411 : vector<1x8x128xf32> to vector<8x128xf32>
    %413 = vector.shape_cast %410 : vector<8x128xf32> to vector<1x8x128xf32>
    tpu.vector_store %arg5[%c0_67, %c0_68, %c0_69], %413 {strides = array<i32>} : memref<1x8x128xf32, #tpu.memory_space<vmem>>, vector<1x8x128xf32>,
    return
  }
  func.func @transform_0(%arg0: i32, %arg1: i32) -> (i32, i32) {
    %c0_i32 = arith.constant 0 : i32
    %c0_i32_0 = arith.constant 0 : i32
    %c0_i32_1 = arith.constant 0 : i32
    return %c0_i32, %c0_i32_0 : i32, i32
  }
  func.func @transform_1(%arg0: i32, %arg1: i32) -> (i32, i32, i32, i32) {
    %c0_i32 = arith.constant 0 : i32
    %c0_i32_0 = arith.constant 0 : i32
    %c0_i32_1 = arith.constant 0 : i32
    return %arg0, %c0_i32, %arg1, %c0_i32_0 : i32, i32, i32, i32
  }
  func.func @transform_2(%arg0: i32, %arg1: i32) -> (i32, i32, i32) {
    %c0_i32 = arith.constant 0 : i32
    %c0_i32_0 = arith.constant 0 : i32
    %c0_i32_1 = arith.constant 0 : i32
    return %arg0, %c0_i32, %c0_i32_0 : i32, i32, i32
  }
  func.func @transform_3(%arg0: i32, %arg1: i32) -> (i32, i32, i32) {
    %c0_i32 = arith.constant 0 : i32
    %c0_i32_0 = arith.constant 0 : i32
    %c0_i32_1 = arith.constant 0 : i32
    return %arg0, %c0_i32, %c0_i32_0 : i32, i32, i32
  }
}

</mosaic_0001>

<llo_original>
// kernel: tpu_custom_call.1
$region0: #{tpu_custom_call.1}
  #allocation0 [shape = 'u32[]', space=smem, size = 0x4, offset = 0x4, fixed_abs, tag = 'smem constant byte address 0x4 - core index']
  #allocation1 [shape = 'u32[72,128]{1,0:T(1,128)}', space=vmem, size = 0x9000, scoped, tag = 'internal scratch']
  %s0 = inlined_call_operand.hbm [shape: f32[2,32], index: 0, kind: input, shape index: {}]
  %s1 = inlined_call_operand.hbm [shape: f32[2,4,8,128], index: 1, kind: input, shape index: {}]
  %s2 = inlined_call_operand.hbm [shape: f32[2,8,128], index: 2, kind: output, shape index: {0}]
  %s3 = inlined_call_operand.hbm [shape: f32[2,8,128], index: 3, kind: output, shape index: {1}]
  %4 = xla_tuple %s2, %s3
  %s5 = sld [smem:[#allocation0]]
  $region61: #{tpu_custom_call.1} parent=0
    _
  %s7 = ssub.s32 1, %s5
  %s8 = scalar_select 0, %s7, %s5
  $region1: #{tpu_custom_call.1} parent=0
    #allocation2 [shape = 'u8[1024]{0}', space=smem, size = 0x400, scoped, tag = 'input window, operand 0, single buffered']
    #allocation3 [shape = 's32[2]{0}', space=sflag, size = 0x8, scoped, tag = 'scoped memory for tpu_custom_call.1']
    #allocation4 [shape = 's32[2]{0}', space=sflag, size = 0x8, scoped, tag = 'scoped memory for tpu_custom_call.1']
    #allocation5 [shape = 's32[2]{0}', space=sflag, size = 0x8, scoped, tag = 'scoped memory for tpu_custom_call.1']
    #allocation6 [shape = 'u8[32768]{0}', space=vmem, size = 0x8000, scoped, tag = 'input window, operand 1']
    #allocation7 [shape = 'u8[8192]{0}', space=vmem, size = 0x2000, scoped, tag = 'output window, operand 0']
    #allocation8 [shape = 'u8[8192]{0}', space=vmem, size = 0x2000, scoped, tag = 'output window, operand 1']
    #allocation9 [shape = 's32[2]{0}', space=sflag, size = 0x8, scoped, tag = 'scoped memory for tpu_custom_call.1']
    %9 = vsyncpa [#allocation5], 0
    %10 = vsyncpa [#allocation3], 0
    %s11 = scalar_lea.sflag [#allocation3], 1
    %12 = vsyncpa %s11, 0
    %13 = vsyncpa [#allocation4], 0
    %s14 = scalar_lea.sflag [#allocation4], 1
    %15 = vsyncpa %s14, 0
    %16 = vsyncpa [#allocation9], 0
    %s17 = scalar_lea.sflag [#allocation9], 1
    %18 = vsyncpa %s17, 0
    loop: start=0, step=1, limit=4
    $region2: #{tpu_custom_call.1} parent=1 // loop_pre_header
      _
    $region3: #{tpu_custom_call.1} parent=1 // loop_header
      %s20 = sphi 0, %s24
      %p21 = scmp.ge.s32.totalorder %s20, 4
      %s27 = sphi 0, %s39
      %s28 = sphi 0, %s35
      %s29 = sphi 0, %s27
      %s30 = sphi 0, %s28
      %s31 = sphi 0, %s29
      %s32 = sphi 0, %s30
      %s40 = sphi 0, %s40
      %s42 = sphi 0, %s40
      %s43 = sphi 0, %s42
      %s57 = sphi 0, %s43
      %s65 = sphi 0, %s67
      %s68 = sphi 0, %s65
      %s69 = sphi 0, %s68
      %s85 = sphi 0, %s69
      %s91 = sphi 0, %s93
      %s94 = sphi 0, %s91
      %s95 = sphi 0, %s94
      %s111 = sphi 0, %s95
      %s117 = sphi 0, %s119
      %s120 = sphi 0, %s117
      %s121 = sphi 0, %s120
      %s137 = sphi 0, %s121
    $region4: #{tpu_custom_call.1} parent=1 // loop_header_branch
      %23 = sbr.rel (%p21) target = $region8
    $region5: #{tpu_custom_call.1} parent=1 // loop_body
      %s25 = ssub.s32 %s20, 1
      %s26 = ssub.s32 %s20, 2
      %s33 = sadd.s32 1, %s28
      %p34 = scmp.ge.s32.totalorder %s33, 1
      %s35 = scalar_select %p34, 0, %s33
      %s36 = sadd.s32 1, %s27
      %s37 = scalar_select %p34, %s36, %s27
      %p38 = scmp.ge.s32.totalorder %s37, 2
      %s39 = scalar_select %p38, 0, %s37
      %s41 = sadd.s32 %s40, 1
      %p44 = scmp.eq.s32.totalorder %s20, 1
      %p45 = scmp.ne.s32.totalorder %s40, %s42
      %p46 = scmp.eq.s32.totalorder %s20, 0
      %p47 = por %p45, %p46
      %p48 = scmp.ne.s32.totalorder %s40, %s42
      %p49 = scmp.eq.s32.totalorder %s25, 1
      %p50 = por %p48, %p49
      %p51 = scmp.ne.s32.totalorder %s42, %s43
      %p52 = scmp.eq.s32.totalorder %s25, 0
      %p53 = por %p51, %p52
      %p54 = scmp.ne.s32.totalorder %s42, %s43
      %p55 = scmp.eq.s32.totalorder %s26, 1
      %p56 = por %p54, %p55
      %p58 = scmp.ne.s32.totalorder %s43, %s57
      %p59 = scmp.eq.s32.totalorder %s26, 0
      %p60 = por %p58, %p59
      %s61 = ssub.s32 %s27, %s39
      %s62 = ssub.s32 %s28, %s35
      %s63 = sor.u32 %s61, %s62
      %p64 = scmp.eq.s32.totalorder %s63, 0
      %s66 = sadd.s32 %s65, 1
      %s67 = scalar_select %p64, %s65, %s66
      %p70 = pneg %p64
      %p71 = scmp.eq.s32.totalorder %s20, 1
      %p72 = por %p70, %p71
      %p73 = scmp.ne.s32.totalorder %s65, %s68
      %p74 = scmp.eq.s32.totalorder %s20, 0
      %p75 = por %p73, %p74
      %p76 = scmp.ne.s32.totalorder %s65, %s68
      %p77 = scmp.eq.s32.totalorder %s25, 1
      %p78 = por %p76, %p77
      %p79 = scmp.ne.s32.totalorder %s68, %s69
      %p80 = scmp.eq.s32.totalorder %s25, 0
      %p81 = por %p79, %p80
      %p82 = scmp.ne.s32.totalorder %s68, %s69
      %p83 = scmp.eq.s32.totalorder %s26, 1
      %p84 = por %p82, %p83
      %p86 = scmp.ne.s32.totalorder %s69, %s85
      %p87 = scmp.eq.s32.totalorder %s26, 0
      %p88 = por %p86, %p87
      %s89 = ssub.s32 %s27, %s39
      %p90 = scmp.eq.s32.totalorder %s89, 0
      %s92 = sadd.s32 %s91, 1
      %s93 = scalar_select %p90, %s91, %s92
      %p96 = pneg %p90
      %p97 = scmp.eq.s32.totalorder %s20, 1
      %p98 = por %p96, %p97
      %p99 = scmp.ne.s32.totalorder %s91, %s94
      %p100 = scmp.eq.s32.totalorder %s20, 0
      %p101 = por %p99, %p100
      %p102 = scmp.ne.s32.totalorder %s91, %s94
      %p103 = scmp.eq.s32.totalorder %s25, 1
      %p104 = por %p102, %p103
      %p105 = scmp.ne.s32.totalorder %s94, %s95
      %p106 = scmp.eq.s32.totalorder %s25, 0
      %p107 = por %p105, %p106
      %p108 = scmp.ne.s32.totalorder %s94, %s95
      %p109 = scmp.eq.s32.totalorder %s26, 1
      %p110 = por %p108, %p109
      %p112 = scmp.ne.s32.totalorder %s95, %s111
      %p113 = scmp.eq.s32.totalorder %s26, 0
      %p114 = por %p112, %p113
      %s115 = ssub.s32 %s27, %s39
      %p116 = scmp.eq.s32.totalorder %s115, 0
      %s118 = sadd.s32 %s117, 1
      %s119 = scalar_select %p116, %s117, %s118
      %p122 = pneg %p116
      %p123 = scmp.eq.s32.totalorder %s20, 1
      %p124 = por %p122, %p123
      %p125 = scmp.ne.s32.totalorder %s117, %s120
      %p126 = scmp.eq.s32.totalorder %s20, 0
      %p127 = por %p125, %p126
      %p128 = scmp.ne.s32.totalorder %s117, %s120
      %p129 = scmp.eq.s32.totalorder %s25, 1
      %p130 = por %p128, %p129
      %p131 = scmp.ne.s32.totalorder %s120, %s121
      %p132 = scmp.eq.s32.totalorder %s25, 0
      %p133 = por %p131, %p132
      %p134 = scmp.ne.s32.totalorder %s120, %s121
      %p135 = scmp.eq.s32.totalorder %s26, 1
      %p136 = por %p134, %p135
      %p138 = scmp.ne.s32.totalorder %s121, %s137
      %p139 = scmp.eq.s32.totalorder %s26, 0
      %p140 = por %p138, %p139
      %p141 = scmp.le.s32.totalorder 1, %s20
      %p142 = scmp.lt.s32.totalorder %s20, 3
      %p143 = pnand %p141, %p142
      %p144 = pneg %p143
      // Predicated region
      $region9: #{tpu_custom_call.1} parent=5 // pred_check
        _
      $region10: #{tpu_custom_call.1} parent=5 // pred_check_branch
        %146 = sbr.rel (%p143) target = $region12
      $region11: #{tpu_custom_call.1} parent=5 // pred_region
        %s147 = ssub.s32 %s20, 1
        // Predicated region
        $region13: #{tpu_custom_call.1} parent=11 // pred_check
          %p148 = pneg %p53
        $region14: #{tpu_custom_call.1} parent=11 // pred_check_branch
          %150 = sbr.rel (%p148) target = $region16
        $region15: #{tpu_custom_call.1} parent=11 // pred_region
          %152 = vsyncadd [#allocation5], 0
          %s154 = sshll.u32 %s0, 4
          %s155 = int_to_ptr.hbm [resolvable:$true] %s154
          %157 = dma.hbm_to_smem %s155, 32, [#allocation2], [#allocation5]
        $region16: #{tpu_custom_call.1} parent=11 // pred_fallthru
          _
      $region12: #{tpu_custom_call.1} parent=5 // pred_fallthru
        _
      %p158 = scmp.lt.s32.totalorder %s20, 2
      // Predicated region
      $region17: #{tpu_custom_call.1} parent=5 // pred_check
        %p159 = pneg %p158
      $region18: #{tpu_custom_call.1} parent=5 // pred_check_branch
        %161 = sbr.rel (%p159) target = $region20
      $region19: #{tpu_custom_call.1} parent=5 // pred_region
        // Predicated region
        $region21: #{tpu_custom_call.1} parent=19 // pred_check
          %p162 = pneg %p75
        $region22: #{tpu_custom_call.1} parent=19 // pred_check_branch
          %164 = sbr.rel (%p162) target = $region24
        $region23: #{tpu_custom_call.1} parent=19 // pred_region
          %s165 = sand.u32 %s65, 1
          %s166 = scalar_lea.sflag [#allocation3], %s165
          %s167 = sand.u32 %s65, 1
          %s168 = smul.addr %s167, 32
          %s169 = scalar_lea.vmem [#allocation6], %s168
          %171 = vsyncadd %s166, 0
          %s172 = smul.addr %s27, 4
          %s173 = sadd.s32 %s28, %s172
          %s174 = smul.addr %s173, 8
          %s175 = scalar_lea.hbm %s1, %s174
          %s176 = sshll.u32 %s175, 4
          %s177 = int_to_ptr.hbm [resolvable:$true] %s176
          %s178 = sshll.u32 %s169, 4
          %s179 = int_to_ptr.vmem [resolvable:$true] %s178
          %184 = dma.hbm_to_vmem [thread:$0]  %s177, 512, %s179, %s166, 128, 128, 8
        $region24: #{tpu_custom_call.1} parent=19 // pred_fallthru
          _
      $region20: #{tpu_custom_call.1} parent=5 // pred_fallthru
        _
      %p185 = scmp.le.s32.totalorder 1, %s20
      %p186 = scmp.lt.s32.totalorder %s20, 3
      %p187 = pnand %p185, %p186
      %p188 = pneg %p187
      // Predicated region
      $region25: #{tpu_custom_call.1} parent=5 // pred_check
        _
      $region26: #{tpu_custom_call.1} parent=5 // pred_check_branch
        %190 = sbr.rel (%p187) target = $region28
      $region27: #{tpu_custom_call.1} parent=5 // pred_region
        %s191 = ssub.s32 %s20, 1
        // Predicated region
        $region29: #{tpu_custom_call.1} parent=27 // pred_check
          %p192 = pneg %p53
        $region30: #{tpu_custom_call.1} parent=27 // pred_check_branch
          %194 = sbr.rel (%p192) target = $region32
        $region31: #{tpu_custom_call.1} parent=27 // pred_region
          %196 = dma.done [#allocation5], 32
        $region32: #{tpu_custom_call.1} parent=27 // pred_fallthru
          _
        %s197 = sand.u32 %s68, 1
        %s198 = scalar_lea.sflag [#allocation3], %s197
        %s199 = sand.u32 %s68, 1
        %s200 = smul.addr %s199, 32
        %s201 = scalar_lea.vmem [#allocation6], %s200
        // Predicated region
        $region33: #{tpu_custom_call.1} parent=27 // pred_check
          %p202 = pneg %p81
        $region34: #{tpu_custom_call.1} parent=27 // pred_check_branch
          %204 = sbr.rel (%p202) target = $region36
        $region35: #{tpu_custom_call.1} parent=27 // pred_region
          %206 = dma.done %s198, 512
        $region36: #{tpu_custom_call.1} parent=27 // pred_fallthru
          _
        %207 = sfence
        %p208 = pneg %p53
        %p209 = pneg %p50
        %s210 = sand.u32 %s68, 1
        %s211 = scalar_lea.sflag [#allocation3], %s210
        %s212 = sand.u32 %s68, 1
        %s213 = smul.addr %s212, 32
        %s214 = scalar_lea.vmem [#allocation6], %s213
        %p215 = pneg %p81
        %p216 = pneg %p78
        %p217 = pneg %p107
        %p218 = pneg %p104
        %s219 = sand.u32 %s94, 1
        %s220 = scalar_lea.sflag [#allocation4], %s219
        %s221 = sand.u32 %s94, 1
        %s222 = smul.addr %s221, 8
        %s223 = scalar_lea.vmem [#allocation7], %s222
        %p224 = pneg %p133
        %p225 = pneg %p130
        %s226 = sand.u32 %s120, 1
        %s227 = scalar_lea.sflag [#allocation9], %s226
        %s228 = sand.u32 %s120, 1
        %s229 = smul.addr %s228, 8
        %s230 = scalar_lea.vmem [#allocation8], %s229
        %p231 = scmp.eq.s32.totalorder %s30, 0
        // Predicated region
        $region37: #{tpu_custom_call.1} parent=27 // pred_check
          %p232 = pneg %p231
        $region38: #{tpu_custom_call.1} parent=27 // pred_check_branch
          %234 = sbr.rel (%p232) target = $region40
        $region39: #{tpu_custom_call.1} parent=27 // pred_region
          %235 = vst [vmem:[%s223] sm:$0xff] 0.0
          %236 = vst [vmem:[%s230] sm:$0xff] 0.0
        $region40: #{tpu_custom_call.1} parent=27 // pred_fallthru
          _
        %v237 = vld [vmem:[%s201] sm:$0xff]
        %s238 = scalar_lea.vmem %s201, 8 [#allocation6]
        %v239 = vld [vmem:[%s238] sm:$0xff]
        %s240 = scalar_lea.vmem %s201, 16 [#allocation6]
        %v241 = vld [vmem:[%s240] sm:$0xff]
        %s242 = scalar_lea.vmem %s201, 24 [#allocation6]
        %v243 = vld [vmem:[%s242] sm:$0xff]
        %v244 = vsub.f32 %v241, %v237
        %v245 = vsub.f32 %v243, %v239
        %v246 = vmul.f32 %v244, %v245
        %s247 = smul.u32 %s29, 128
        %s248 = sld [smem:[#allocation2 + %s247]]
        %s249 = sadd.s32 %s247, 1
        %s250 = sld [smem:[#allocation2 + %s249]]
        %s251 = sadd.s32 %s247, 2
        %s252 = sld [smem:[#allocation2 + %s251]]
        %s253 = sadd.s32 %s247, 3
        %s254 = sld [smem:[#allocation2 + %s253]]
        %v255 = vstv %s248
        %v256 = vmax.f32 %v237, %v255
        %v257 = vstv %s250
        %v258 = vmax.f32 %v239, %v257
        %v259 = vstv %s252
        %v260 = vmin.f32 %v241, %v259
        %v261 = vstv %s254
        %v262 = vmin.f32 %v243, %v261
        %v263 = vsub.f32 %v260, %v256
        %v264 = vmax.f32 %v263, 0.0
        %v265 = vsub.f32 %v262, %v258
        %v266 = vmax.f32 %v265, 0.0
        %v267 = vmul.f32 %v264, %v266
        %s268 = ssub.f32 %s252, %s248
        %s269 = ssub.f32 %s254, %s250
        %s270 = smul.f32 %s268, %s269
        %v271 = vstv %s270
        %v272 = vadd.f32 %v246, %v271
        %v273 = vsub.f32 %v272, %v267
        %v274 = vadd.f32 %v273, 1e-06
        %v275 = vrcp.pop %v274
        %v276 = vmul.f32 %v274, %v275
        %v277 = vsub.f32 1.0, %v276
        %v278 = vmul.f32 %v275, %v277
        %v279 = vadd.f32 %v275, %v278
        %vm280 = vweird.f32 %v274
        %vm281 = vweird.f32 %v275
        %vm282 = vmor %vm280, %vm281
        %v283 = vsel %vm282, %v275, %v279
        %v284 = vand.u32 2147483647, %v274
        %vm285 = vcmp.eq.f32.partialorder %v284, 8.507059e+37
        %v286 = vand.u32 %v274, 2147483648
        %v287 = vor.u32 1.1754944e-38, %v286
        %v288 = vsel %vm285, %v287, %v283
        %v289 = vmul.f32 %v267, %v288
        %vm290 = vcmp.gt.f32.partialorder %v289, -1.0
        %v291 = vsel %vm290, %v289, -1.0
        %v292 = vsel %vm290, %v255, 0.0
        %v293 = vsel %vm290, %v257, 0.0
        %v294 = vsel %vm290, %v259, 0.0
        %v295 = vsel %vm290, %v261, 0.0
        %s296 = sadd.s32 %s247, 4
        %s297 = sld [smem:[#allocation2 + %s296]]
        %s298 = sadd.s32 %s247, 5
        %s299 = sld [smem:[#allocation2 + %s298]]
        %s300 = sadd.s32 %s247, 6
        %s301 = sld [smem:[#allocation2 + %s300]]
        %s302 = sadd.s32 %s247, 7
        %s303 = sld [smem:[#allocation2 + %s302]]
        %v304 = vstv %s297
        %v305 = vmax.f32 %v237, %v304
        %v306 = vstv %s299
        %v307 = vmax.f32 %v239, %v306
        %v308 = vstv %s301
        %v309 = vmin.f32 %v241, %v308
        %v310 = vstv %s303
        %v311 = vmin.f32 %v243, %v310
        %v312 = vsub.f32 %v309, %v305
        %v313 = vmax.f32 %v312, 0.0
        %v314 = vsub.f32 %v311, %v307
        %v315 = vmax.f32 %v314, 0.0
        %v316 = vmul.f32 %v313, %v315
        %s317 = ssub.f32 %s301, %s297
        %s318 = ssub.f32 %s303, %s299
        %s319 = smul.f32 %s317, %s318
        %v320 = vstv %s319
        %v321 = vadd.f32 %v246, %v320
        %v322 = vsub.f32 %v321, %v316
        %v323 = vadd.f32 %v322, 1e-06
        %v324 = vrcp.pop %v323
        %v325 = vmul.f32 %v323, %v324
        %v326 = vsub.f32 1.0, %v325
        %v327 = vmul.f32 %v324, %v326
        %v328 = vadd.f32 %v324, %v327
        %vm329 = vweird.f32 %v323
        %vm330 = vweird.f32 %v324
        %vm331 = vmor %vm329, %vm330
        %v332 = vsel %vm331, %v324, %v328
        %v333 = vand.u32 2147483647, %v323
        %vm334 = vcmp.eq.f32.partialorder %v333, 8.507059e+37
        %v335 = vand.u32 %v323, 2147483648
        %v336 = vor.u32 1.1754944e-38, %v335
        %v337 = vsel %vm334, %v336, %v332
        %v338 = vmul.f32 %v316, %v337
        %vm339 = vcmp.gt.f32.partialorder %v338, %v291
        %v340 = vsel %vm339, %v338, %v291
        %v341 = vsel %vm339, %v304, %v292
        %v342 = vsel %vm339, %v306, %v293
        %v343 = vsel %vm339, %v308, %v294
        %v344 = vsel %vm339, %v310, %v295
        %s345 = sadd.s32 %s247, 8
        %s346 = sld [smem:[#allocation2 + %s345]]
        %s347 = sadd.s32 %s247, 9
        %s348 = sld [smem:[#allocation2 + %s347]]
        %s349 = sadd.s32 %s247, 10
        %s350 = sld [smem:[#allocation2 + %s349]]
        %s351 = sadd.s32 %s247, 11
        %s352 = sld [smem:[#allocation2 + %s351]]
        %v353 = vstv %s346
        %v354 = vmax.f32 %v237, %v353
        %v355 = vstv %s348
        %v356 = vmax.f32 %v239, %v355
        %v357 = vstv %s350
        %v358 = vmin.f32 %v241, %v357
        %v359 = vstv %s352
        %v360 = vmin.f32 %v243, %v359
        %v361 = vsub.f32 %v358, %v354
        %v362 = vmax.f32 %v361, 0.0
        %v363 = vsub.f32 %v360, %v356
        %v364 = vmax.f32 %v363, 0.0
        %v365 = vmul.f32 %v362, %v364
        %s366 = ssub.f32 %s350, %s346
        %s367 = ssub.f32 %s352, %s348
        %s368 = smul.f32 %s366, %s367
        %v369 = vstv %s368
        %v370 = vadd.f32 %v246, %v369
        %v371 = vsub.f32 %v370, %v365
        %v372 = vadd.f32 %v371, 1e-06
        %v373 = vrcp.pop %v372
        %v374 = vmul.f32 %v372, %v373
        %v375 = vsub.f32 1.0, %v374
        %v376 = vmul.f32 %v373, %v375
        %v377 = vadd.f32 %v373, %v376
        %vm378 = vweird.f32 %v372
        %vm379 = vweird.f32 %v373
        %vm380 = vmor %vm378, %vm379
        %v381 = vsel %vm380, %v373, %v377
        %v382 = vand.u32 2147483647, %v372
        %vm383 = vcmp.eq.f32.partialorder %v382, 8.507059e+37
        %v384 = vand.u32 %v372, 2147483648
        %v385 = vor.u32 1.1754944e-38, %v384
        %v386 = vsel %vm383, %v385, %v381
        %v387 = vmul.f32 %v365, %v386
        %vm388 = vcmp.gt.f32.partialorder %v387, %v340
        %v389 = vsel %vm388, %v387, %v340
        %v390 = vsel %vm388, %v353, %v341
        %v391 = vsel %vm388, %v355, %v342
        %v392 = vsel %vm388, %v357, %v343
        %v393 = vsel %vm388, %v359, %v344
        %s394 = sadd.s32 %s247, 12
        %s395 = sld [smem:[#allocation2 + %s394]]
        %s396 = sadd.s32 %s247, 13
        %s397 = sld [smem:[#allocation2 + %s396]]
        %s398 = sadd.s32 %s247, 14
        %s399 = sld [smem:[#allocation2 + %s398]]
        %s400 = sadd.s32 %s247, 15
        %s401 = sld [smem:[#allocation2 + %s400]]
        %v402 = vstv %s395
        %v403 = vmax.f32 %v237, %v402
        %v404 = vstv %s397
        %v405 = vmax.f32 %v239, %v404
        %v406 = vstv %s399
        %v407 = vmin.f32 %v241, %v406
        %v408 = vstv %s401
        %v409 = vmin.f32 %v243, %v408
        %v410 = vsub.f32 %v407, %v403
        %v411 = vmax.f32 %v410, 0.0
        %v412 = vsub.f32 %v409, %v405
        %v413 = vmax.f32 %v412, 0.0
        %v414 = vmul.f32 %v411, %v413
        %s415 = ssub.f32 %s399, %s395
        %s416 = ssub.f32 %s401, %s397
        %s417 = smul.f32 %s415, %s416
        %v418 = vstv %s417
        %v419 = vadd.f32 %v246, %v418
        %v420 = vsub.f32 %v419, %v414
        %v421 = vadd.f32 %v420, 1e-06
        %v422 = vrcp.pop %v421
        %v423 = vmul.f32 %v421, %v422
        %v424 = vsub.f32 1.0, %v423
        %v425 = vmul.f32 %v422, %v424
        %v426 = vadd.f32 %v422, %v425
        %vm427 = vweird.f32 %v421
        %vm428 = vweird.f32 %v422
        %vm429 = vmor %vm427, %vm428
        %v430 = vsel %vm429, %v422, %v426
        %v431 = vand.u32 2147483647, %v421
        %vm432 = vcmp.eq.f32.partialorder %v431, 8.507059e+37
        %v433 = vand.u32 %v421, 2147483648
        %v434 = vor.u32 1.1754944e-38, %v433
        %v435 = vsel %vm432, %v434, %v430
        %v436 = vmul.f32 %v414, %v435
        %vm437 = vcmp.gt.f32.partialorder %v436, %v389
        %v438 = vsel %vm437, %v436, %v389
        %v439 = vsel %vm437, %v402, %v390
        %v440 = vsel %vm437, %v404, %v391
        %v441 = vsel %vm437, %v406, %v392
        %v442 = vsel %vm437, %v408, %v393
        %s443 = sadd.s32 %s247, 16
        %s444 = sld [smem:[#allocation2 + %s443]]
        %s445 = sadd.s32 %s247, 17
        %s446 = sld [smem:[#allocation2 + %s445]]
        %s447 = sadd.s32 %s247, 18
        %s448 = sld [smem:[#allocation2 + %s447]]
        %s449 = sadd.s32 %s247, 19
        %s450 = sld [smem:[#allocation2 + %s449]]
        %v451 = vstv %s444
        %v452 = vmax.f32 %v237, %v451
        %v453 = vstv %s446
        %v454 = vmax.f32 %v239, %v453
        %v455 = vstv %s448
        %v456 = vmin.f32 %v241, %v455
        %v457 = vstv %s450
        %v458 = vmin.f32 %v243, %v457
        %v459 = vsub.f32 %v456, %v452
        %v460 = vmax.f32 %v459, 0.0
        %v461 = vsub.f32 %v458, %v454
        %v462 = vmax.f32 %v461, 0.0
        %v463 = vmul.f32 %v460, %v462
        %s464 = ssub.f32 %s448, %s444
        %s465 = ssub.f32 %s450, %s446
        %s466 = smul.f32 %s464, %s465
        %v467 = vstv %s466
        %v468 = vadd.f32 %v246, %v467
        %v469 = vsub.f32 %v468, %v463
        %v470 = vadd.f32 %v469, 1e-06
        %v471 = vrcp.pop %v470
        %v472 = vmul.f32 %v470, %v471
        %v473 = vsub.f32 1.0, %v472
        %v474 = vmul.f32 %v471, %v473
        %v475 = vadd.f32 %v471, %v474
        %vm476 = vweird.f32 %v470
        %vm477 = vweird.f32 %v471
        %vm478 = vmor %vm476, %vm477
        %v479 = vsel %vm478, %v471, %v475
        %v480 = vand.u32 2147483647, %v470
        %vm481 = vcmp.eq.f32.partialorder %v480, 8.507059e+37
        %v482 = vand.u32 %v470, 2147483648
        %v483 = vor.u32 1.1754944e-38, %v482
        %v484 = vsel %vm481, %v483, %v479
        %v485 = vmul.f32 %v463, %v484
        %vm486 = vcmp.gt.f32.partialorder %v485, %v438
        %v487 = vsel %vm486, %v485, %v438
        %v488 = vsel %vm486, %v451, %v439
        %v489 = vsel %vm486, %v453, %v440
        %v490 = vsel %vm486, %v455, %v441
        %v491 = vsel %vm486, %v457, %v442
        %s492 = sadd.s32 %s247, 20
        %s493 = sld [smem:[#allocation2 + %s492]]
        %s494 = sadd.s32 %s247, 21
        %s495 = sld [smem:[#allocation2 + %s494]]
        %s496 = sadd.s32 %s247, 22
        %s497 = sld [smem:[#allocation2 + %s496]]
        %s498 = sadd.s32 %s247, 23
        %s499 = sld [smem:[#allocation2 + %s498]]
        %v500 = vstv %s493
        %v501 = vmax.f32 %v237, %v500
        %v502 = vstv %s495
        %v503 = vmax.f32 %v239, %v502
        %v504 = vstv %s497
        %v505 = vmin.f32 %v241, %v504
        %v506 = vstv %s499
        %v507 = vmin.f32 %v243, %v506
        %v508 = vsub.f32 %v505, %v501
        %v509 = vmax.f32 %v508, 0.0
        %v510 = vsub.f32 %v507, %v503
        %v511 = vmax.f32 %v510, 0.0
        %v512 = vmul.f32 %v509, %v511
        %s513 = ssub.f32 %s497, %s493
        %s514 = ssub.f32 %s499, %s495
        %s515 = smul.f32 %s513, %s514
        %v516 = vstv %s515
        %v517 = vadd.f32 %v246, %v516
        %v518 = vsub.f32 %v517, %v512
        %v519 = vadd.f32 %v518, 1e-06
        %v520 = vrcp.pop %v519
        %v521 = vmul.f32 %v519, %v520
        %v522 = vsub.f32 1.0, %v521
        %v523 = vmul.f32 %v520, %v522
        %v524 = vadd.f32 %v520, %v523
        %vm525 = vweird.f32 %v519
        %vm526 = vweird.f32 %v520
        %vm527 = vmor %vm525, %vm526
        %v528 = vsel %vm527, %v520, %v524
        %v529 = vand.u32 2147483647, %v519
        %vm530 = vcmp.eq.f32.partialorder %v529, 8.507059e+37
        %v531 = vand.u32 %v519, 2147483648
        %v532 = vor.u32 1.1754944e-38, %v531
        %v533 = vsel %vm530, %v532, %v528
        %v534 = vmul.f32 %v512, %v533
        %vm535 = vcmp.gt.f32.partialorder %v534, %v487
        %v536 = vsel %vm535, %v534, %v487
        %v537 = vsel %vm535, %v500, %v488
        %v538 = vsel %vm535, %v502, %v489
        %v539 = vsel %vm535, %v504, %v490
        %v540 = vsel %vm535, %v506, %v491
        %s541 = sadd.s32 %s247, 24
        %s542 = sld [smem:[#allocation2 + %s541]]
        %s543 = sadd.s32 %s247, 25
        %s544 = sld [smem:[#allocation2 + %s543]]
        %s545 = sadd.s32 %s247, 26
        %s546 = sld [smem:[#allocation2 + %s545]]
        %s547 = sadd.s32 %s247, 27
        %s548 = sld [smem:[#allocation2 + %s547]]
        %v549 = vstv %s542
        %v550 = vmax.f32 %v237, %v549
        %v551 = vstv %s544
        %v552 = vmax.f32 %v239, %v551
        %v553 = vstv %s546
        %v554 = vmin.f32 %v241, %v553
        %v555 = vstv %s548
        %v556 = vmin.f32 %v243, %v555
        %v557 = vsub.f32 %v554, %v550
        %v558 = vmax.f32 %v557, 0.0
        %v559 = vsub.f32 %v556, %v552
        %v560 = vmax.f32 %v559, 0.0
        %v561 = vmul.f32 %v558, %v560
        %s562 = ssub.f32 %s546, %s542
        %s563 = ssub.f32 %s548, %s544
        %s564 = smul.f32 %s562, %s563
        %v565 = vstv %s564
        %v566 = vadd.f32 %v246, %v565
        %v567 = vsub.f32 %v566, %v561
        %v568 = vadd.f32 %v567, 1e-06
        %v569 = vrcp.pop %v568
        %v570 = vmul.f32 %v568, %v569
        %v571 = vsub.f32 1.0, %v570
        %v572 = vmul.f32 %v569, %v571
        %v573 = vadd.f32 %v569, %v572
        %vm574 = vweird.f32 %v568
        %vm575 = vweird.f32 %v569
        %vm576 = vmor %vm574, %vm575
        %v577 = vsel %vm576, %v569, %v573
        %v578 = vand.u32 2147483647, %v568
        %vm579 = vcmp.eq.f32.partialorder %v578, 8.507059e+37
        %v580 = vand.u32 %v568, 2147483648
        %v581 = vor.u32 1.1754944e-38, %v580
        %v582 = vsel %vm579, %v581, %v577
        %v583 = vmul.f32 %v561, %v582
        %vm584 = vcmp.gt.f32.partialorder %v583, %v536
        %v585 = vsel %vm584, %v583, %v536
        %v586 = vsel %vm584, %v549, %v537
        %v587 = vsel %vm584, %v551, %v538
        %v588 = vsel %vm584, %v553, %v539
        %v589 = vsel %vm584, %v555, %v540
        %s590 = sadd.s32 %s247, 28
        %s591 = sld [smem:[#allocation2 + %s590]]
        %s592 = sadd.s32 %s247, 29
        %s593 = sld [smem:[#allocation2 + %s592]]
        %s594 = sadd.s32 %s247, 30
        %s595 = sld [smem:[#allocation2 + %s594]]
        %s596 = sadd.s32 %s247, 31
        %s597 = sld [smem:[#allocation2 + %s596]]
        %v598 = vstv %s591
        %v599 = vmax.f32 %v237, %v598
        %v600 = vstv %s593
        %v601 = vmax.f32 %v239, %v600
        %v602 = vstv %s595
        %v603 = vmin.f32 %v241, %v602
        %v604 = vstv %s597
        %v605 = vmin.f32 %v243, %v604
        %v606 = vsub.f32 %v603, %v599
        %v607 = vmax.f32 %v606, 0.0
        %v608 = vsub.f32 %v605, %v601
        %v609 = vmax.f32 %v608, 0.0
        %v610 = vmul.f32 %v607, %v609
        %s611 = ssub.f32 %s595, %s591
        %s612 = ssub.f32 %s597, %s593
        %s613 = smul.f32 %s611, %s612
        %v614 = vstv %s613
        %v615 = vadd.f32 %v246, %v614
        %v616 = vsub.f32 %v615, %v610
        %v617 = vadd.f32 %v616, 1e-06
        %v618 = vrcp.pop %v617
        %v619 = vmul.f32 %v617, %v618
        %v620 = vsub.f32 1.0, %v619
        %v621 = vmul.f32 %v618, %v620
        %v622 = vadd.f32 %v618, %v621
        %vm623 = vweird.f32 %v617
        %vm624 = vweird.f32 %v618
        %vm625 = vmor %vm623, %vm624
        %v626 = vsel %vm625, %v618, %v622
        %v627 = vand.u32 2147483647, %v617
        %vm628 = vcmp.eq.f32.partialorder %v627, 8.507059e+37
        %v629 = vand.u32 %v617, 2147483648
        %v630 = vor.u32 1.1754944e-38, %v629
        %v631 = vsel %vm628, %v630, %v626
        %v632 = vmul.f32 %v610, %v631
        %vm633 = vcmp.gt.f32.partialorder %v632, %v585
        %v634 = vsel %vm633, %v632, %v585
        %v635 = vsel %vm633, %v598, %v586
        %v636 = vsel %vm633, %v600, %v587
        %v637 = vsel %vm633, %v602, %v588
        %v638 = vsel %vm633, %v604, %v589
        %vm639 = vcmp.gt.f32.partialorder %v634, 0.5
        %v640 = vsub.f32 %v237, %v635
        %v641 = vand.u32 2147483647, %v640
        %vm642 = vcmp.lt.f32.partialorder %v641, 1.0
        %v643 = vmul.f32 %v641, 0.5
        %v644 = vmul.f32 %v643, %v641
        %v645 = vsub.f32 %v641, 0.5
        %v646 = vsel %vm642, %v644, %v645
        %v647 = vsub.f32 %v239, %v636
        %v648 = vand.u32 2147483647, %v647
        %vm649 = vcmp.lt.f32.partialorder %v648, 1.0
        %v650 = vmul.f32 %v648, 0.5
        %v651 = vmul.f32 %v650, %v648
        %v652 = vsub.f32 %v648, 0.5
        %v653 = vsel %vm649, %v651, %v652
        %v654 = vadd.f32 %v646, %v653
        %v655 = vsub.f32 %v241, %v637
        %v656 = vand.u32 2147483647, %v655
        %vm657 = vcmp.lt.f32.partialorder %v656, 1.0
        %v658 = vmul.f32 %v656, 0.5
        %v659 = vmul.f32 %v658, %v656
        %v660 = vsub.f32 %v656, 0.5
        %v661 = vsel %vm657, %v659, %v660
        %v662 = vadd.f32 %v654, %v661
        %v663 = vsub.f32 %v243, %v638
        %v664 = vand.u32 2147483647, %v663
        %vm665 = vcmp.lt.f32.partialorder %v664, 1.0
        %v666 = vmul.f32 %v664, 0.5
        %v667 = vmul.f32 %v666, %v664
        %v668 = vsub.f32 %v664, 0.5
        %v669 = vsel %vm665, %v667, %v668
        %v670 = vadd.f32 %v662, %v669
        %v671 = vld [vmem:[%s223] sm:$0xff]
        %v672 = vsel %vm639, %v670, 0.0
        %v673 = vadd.f32 %v671, %v672
        %674 = vst [vmem:[%s223] sm:$0xff] %v673
        %v675 = vld [vmem:[%s230] sm:$0xff]
        %v676 = vsel %vm639, 1.0, 0.0
        %v677 = vadd.f32 %v675, %v676
        %678 = vst [vmem:[%s230] sm:$0xff] %v677
        %s679 = sand.u32 %s94, 1
        %s680 = scalar_lea.sflag [#allocation4], %s679
        %s681 = sand.u32 %s94, 1
        %s682 = smul.addr %s681, 8
        %s683 = scalar_lea.vmem [#allocation7], %s682
        %s684 = sand.u32 %s120, 1
        %s685 = scalar_lea.sflag [#allocation9], %s684
        %s686 = sand.u32 %s120, 1
        %s687 = smul.addr %s686, 8
        %s688 = scalar_lea.vmem [#allocation8], %s687
        // Predicated region
        $region41: #{tpu_custom_call.1} parent=27 // pred_check
          %p689 = pneg %p104
        $region42: #{tpu_custom_call.1} parent=27 // pred_check_branch
          %691 = sbr.rel (%p689) target = $region44
        $region43: #{tpu_custom_call.1} parent=27 // pred_region
          %693 = vsyncadd %s680, 0
          %s694 = smul.addr %s29, 8
          %s695 = scalar_lea.hbm %s2, %s694
          %s697 = sshll.u32 %s683, 4
          %s698 = int_to_ptr.vmem [resolvable:$true] %s697
          %s699 = sshll.u32 %s695, 4
          %s700 = int_to_ptr.hbm [resolvable:$true] %s699
          %702 = dma.vmem_to_hbm [thread:$0]  %s698, 128, %s700, %s680
        $region44: #{tpu_custom_call.1} parent=27 // pred_fallthru
          _
        // Predicated region
        $region45: #{tpu_custom_call.1} parent=27 // pred_check
          %p703 = pneg %p130
        $region46: #{tpu_custom_call.1} parent=27 // pred_check_branch
          %705 = sbr.rel (%p703) target = $region48
        $region47: #{tpu_custom_call.1} parent=27 // pred_region
          %707 = vsyncadd %s685, 0
          %s708 = smul.addr %s29, 8
          %s709 = scalar_lea.hbm %s3, %s708
          %s711 = sshll.u32 %s688, 4
          %s712 = int_to_ptr.vmem [resolvable:$true] %s711
          %s713 = sshll.u32 %s709, 4
          %s714 = int_to_ptr.hbm [resolvable:$true] %s713
          %716 = dma.vmem_to_hbm [thread:$0]  %s712, 128, %s714, %s685
        $region48: #{tpu_custom_call.1} parent=27 // pred_fallthru
          _
      $region28: #{tpu_custom_call.1} parent=5 // pred_fallthru
        _
      %p717 = scmp.le.s32.totalorder 2, %s20
      // Predicated region
      $region49: #{tpu_custom_call.1} parent=5 // pred_check
        %p718 = pneg %p717
      $region50: #{tpu_custom_call.1} parent=5 // pred_check_branch
        %720 = sbr.rel (%p718) target = $region52
      $region51: #{tpu_custom_call.1} parent=5 // pred_region
        %s721 = ssub.s32 %s20, 2
        // Predicated region
        $region53: #{tpu_custom_call.1} parent=51 // pred_check
          %p722 = pneg %p110
        $region54: #{tpu_custom_call.1} parent=51 // pred_check_branch
          %724 = sbr.rel (%p722) target = $region56
        $region55: #{tpu_custom_call.1} parent=51 // pred_region
          %s725 = sand.u32 %s95, 1
          %s726 = scalar_lea.sflag [#allocation4], %s725
          %s727 = sand.u32 %s95, 1
          %s728 = smul.addr %s727, 8
          %s729 = scalar_lea.vmem [#allocation7], %s728
          %731 = dma.done %s726, 128
        $region56: #{tpu_custom_call.1} parent=51 // pred_fallthru
          _
        // Predicated region
        $region57: #{tpu_custom_call.1} parent=51 // pred_check
          %p732 = pneg %p136
        $region58: #{tpu_custom_call.1} parent=51 // pred_check_branch
          %734 = sbr.rel (%p732) target = $region60
        $region59: #{tpu_custom_call.1} parent=51 // pred_region
          %s735 = sand.u32 %s121, 1
          %s736 = scalar_lea.sflag [#allocation9], %s735
          %s737 = sand.u32 %s121, 1
          %s738 = smul.addr %s737, 8
          %s739 = scalar_lea.vmem [#allocation8], %s738
          %741 = dma.done %s736, 128
        $region60: #{tpu_custom_call.1} parent=51 // pred_fallthru
          _
      $region52: #{tpu_custom_call.1} parent=5 // pred_fallthru
        _
    $region6: #{tpu_custom_call.1} parent=1 // loop_footer
      %s24 = sadd.s32 1, %s20
    $region7: #{tpu_custom_call.1} parent=1 // loop_footer_branch
      %19 = sbr.rel target = $region3
    $region8: #{tpu_custom_call.1} parent=1 // loop_exit
      _
    %742 = vsyncpa [#allocation3], 1
    %s743 = scalar_lea.sflag [#allocation3], 1
    %744 = vsyncpa %s743, 1
    %745 = vsyncpa [#allocation4], 1
    %s746 = scalar_lea.sflag [#allocation4], 1
    %747 = vsyncpa %s746, 1
    %748 = vsyncpa [#allocation9], 1
    %s749 = scalar_lea.sflag [#allocation9], 1
    %750 = vsyncpa %s749, 1
    %751 = vsyncpa [#allocation5], 1
    %s752 = scalar_lea.sflag [#allocation5], 1
    %753 = vsyncpa %s752, 1

</llo_original>
